<compile_context>
chip_gen: v6e
topology: v6e:2x2x1
jax: 0.10.0
libtpu: 0.0.40
codegen_flags: <defaults>
</compile_context>

<pallas_src>
import math

import jax
import jax.numpy as jnp
from jax.experimental import pallas as pl
from jax.experimental.pallas import tpu as pltpu


def _pos_enc_kernel(x_ref, pe_ref, o_ref):
    # x_ref / o_ref: (bb, ts, D) block; pe_ref: (ts, D) block in x's dtype
    # (shared across the batch block and across the batch grid axis).
    o_ref[...] = (x_ref[...] + pe_ref[...][None, :, :]).astype(o_ref.dtype)


def _make_pe(S, D):
    """f32 sinusoidal table, identical to the PyTorch buffer construction."""
    assert D % 2 == 0, "d_model must be even (matches PyTorch module)"
    position = jnp.arange(S, dtype=jnp.float32)[:, None]                    # (S, 1)
    div_term = jnp.exp(
        jnp.arange(0, D, 2, dtype=jnp.float32) * (-math.log(10000.0) / D)
    )                                                                       # (D//2,)
    angles = position * div_term                                            # (S, D//2)
    # Interleave sin/cos along features: [sin0, cos0, sin1, cos1, ...]
    pe = jnp.stack([jnp.sin(angles), jnp.cos(angles)], axis=-1).reshape(S, D)
    return pe


def _vmem_budget_bytes():
    """Generation-aware budget for the double-buffered working set."""
    try:
        cap = int(pltpu.get_tpu_info().vmem_capacity_bytes)
    except Exception:
        cap = 64 * 1024 * 1024      # conservative: v7x per-TC VMEM
    # Use ~1/4 of physical VMEM for our pipelined blocks, leave the rest
    # for compiler internals / headroom.
    return cap, cap // 4


def _choose_blocks(B, S, D, x_itemsize, pe_itemsize, budget_bytes):
    """Pick (batch_block, seq_tile) so the double-buffered per-step footprint
    (x block + out block + PE block) fits in budget_bytes."""
    # Sublane granularity is dtype-aware: 8 rows f32, 16 rows bf16, 32 int8.
    sub = 8 * max(1, 4 // max(1, x_itemsize))

    def footprint(bb, ts):
        x_blk = bb * ts * D * x_itemsize           # one x block (out is same size)
        pe_blk = ts * D * pe_itemsize              # one PE block
        return 2 * (2 * x_blk + pe_blk)            # x + out + PE, double-buffered

    bb = B
    while True:
        per_row = 2 * (2 * bb * D * x_itemsize + D * pe_itemsize)
        rows = budget_bytes // max(1, per_row)
        ts = S if rows >= S else (rows // sub) * sub
        if ts >= min(S, sub) or bb == 1:
            ts = max(ts, min(S, sub))              # never below one sublane tile
            return bb, ts, footprint(bb, ts)
        bb = max(1, bb // 2)                       # shrink batch block, retry


def positional_encoding(x):
    """x: (B, S, D). Returns x + PE[:S, :] (PE shipped in x's dtype)."""
    B, S, D = x.shape
    x_itemsize = jnp.dtype(x.dtype).itemsize

    # PE is built in f32; for lower-precision x ship it in x's dtype so the
    # PE DMA stream and VMEM block are halved and the add is a plain VPU add.
    # (bf16+bf16 differs from the f32-add-then-cast reference by <= 1 ulp.)
    pe = _make_pe(S, D)
    if x.dtype != jnp.float32:
        pe = pe.astype(x.dtype)
    pe_itemsize = jnp.dtype(pe.dtype).itemsize

    cap_bytes, budget = _vmem_budget_bytes()
    bb, ts, footprint = _choose_blocks(B, S, D, x_itemsize, pe_itemsize, budget)
    n_s = pl.cdiv(S, ts)
    n_b = pl.cdiv(B, bb)

    vmem_limit = int(min(cap_bytes, max(footprint + (2 << 20), 8 << 20)))

    return pl.pallas_call(
        _pos_enc_kernel,
        out_shape=jax.ShapeDtypeStruct((B, S, D), x.dtype),
        grid_spec=pltpu.PrefetchScalarGridSpec(
            num_scalar_prefetch=0,
            # Sequence tile is the OUTER grid axis so the PE block index is
            # constant over the inner batch axis (fetched once per seq tile).
            grid=(n_s, n_b),
            in_specs=[
                pl.BlockSpec((bb, ts, D), lambda s, b: (b, s, 0)),
                pl.BlockSpec((ts, D), lambda s, b: (s, 0)),
            ],
            out_specs=pl.BlockSpec((bb, ts, D), lambda s, b: (b, s, 0)),
        ),
        # Pure elementwise add is alias-safe: reuse x's buffer for the output.
        input_output_aliases={0: 0},
        compiler_params=pltpu.CompilerParams(
            dimension_semantics=("parallel", "parallel"),
            vmem_limit_bytes=vmem_limit,
        ),
    )(x, pe)


def _reference(x):
    # Pure-JAX reference mirroring the PyTorch buffer construction.
    B, S, D = x.shape
    position = jnp.arange(S, dtype=jnp.float32)[:, None]
    div_term = jnp.exp(
        jnp.arange(0, D, 2, dtype=jnp.float32) * (-math.log(10000.0) / D)
    )
    pe = jnp.zeros((S, D), dtype=jnp.float32)
    pe = pe.at[:, 0::2].set(jnp.sin(position * div_term))
    pe = pe.at[:, 1::2].set(jnp.cos(position * div_term))
    return (x.astype(jnp.float32) + pe[None, :, :]).astype(x.dtype)


if __name__ == "__main__":
    d_model = 512
    batch, seq = 2, 8
    key = jax.random.PRNGKey(0)
    x = jax.random.normal(key, (batch, seq, d_model), dtype=jnp.float32)

    # Compute the reference first (the kernel output may alias x's buffer).
    ref = _reference(x)

    out = positional_encoding(x)
    out = jax.block_until_ready(out)

    assert out.shape == (batch, seq, d_model)
    assert jnp.allclose(out, ref, atol=1e-5, rtol=1e-5), "mismatch vs reference"

    print("KERNEL_OK")
</pallas_src>

<mosaic_0001>
module attributes {stable_mosaic.version = 11 : i64} {
  func.func @_pos_enc_kernel(%arg0: i32, %arg1: i32, %arg2: memref<2x8x512xf32, #tpu.memory_space<vmem>>, %arg3: memref<8x512xf32, #tpu.memory_space<vmem>>, %arg4: memref<2x8x512xf32, #tpu.memory_space<vmem>>) attributes {dimension_semantics = [#tpu.dimension_semantics<parallel>, #tpu.dimension_semantics<parallel>], iteration_bounds = array<i64: 1, 1>, scalar_prefetch = 0 : i64, scratch_operands = 0 : i64, tpu.core_type = #tpu.core_type<tc>, window_params = [{transform_indices = @transform_0, window_bounds = array<i64: 2, 8, 512>}, {transform_indices = @transform_1, window_bounds = array<i64: 8, 512>}, {transform_indices = @transform_2, window_bounds = array<i64: 2, 8, 512>}]} {
    %c0 = arith.constant 0 : index
    %c0_0 = arith.constant 0 : index
    %c0_1 = arith.constant 0 : index
    %0 = vector.load %arg2[%c0, %c0_0, %c0_1] : memref<2x8x512xf32, #tpu.memory_space<vmem>>, vector<2x8x512xf32>
    %c0_2 = arith.constant 0 : index
    %c0_3 = arith.constant 0 : index
    %1 = vector.load %arg3[%c0_2, %c0_3] : memref<8x512xf32, #tpu.memory_space<vmem>>, vector<8x512xf32>
    %2 = vector.shape_cast %1 : vector<8x512xf32> to vector<1x8x512xf32>
    %3 = vector.broadcast %2 : vector<1x8x512xf32> to vector<2x8x512xf32>
    %4 = arith.addf %0, %3 : vector<2x8x512xf32>
    %c0_4 = arith.constant 0 : index
    %c0_5 = arith.constant 0 : index
    %c0_6 = arith.constant 0 : index
    %5 = vector.load %arg4[%c0_4, %c0_5, %c0_6] : memref<2x8x512xf32, #tpu.memory_space<vmem>>, vector<2x8x512xf32>
    tpu.vector_store %arg4[%c0_4, %c0_5, %c0_6], %4 {strides = array<i32>} : memref<2x8x512xf32, #tpu.memory_space<vmem>>, vector<2x8x512xf32>,
    return
  }
  func.func @transform_0(%arg0: i32, %arg1: i32) -> (i32, i32, i32) {
    %c0_i32 = arith.constant 0 : i32
    %c0_i32_0 = arith.constant 0 : i32
    return %arg1, %arg0, %c0_i32 : i32, i32, i32
  }
  func.func @transform_1(%arg0: i32, %arg1: i32) -> (i32, i32) {
    %c0_i32 = arith.constant 0 : i32
    %c0_i32_0 = arith.constant 0 : i32
    return %arg0, %c0_i32 : i32, i32
  }
  func.func @transform_2(%arg0: i32, %arg1: i32) -> (i32, i32, i32) {
    %c0_i32 = arith.constant 0 : i32
    %c0_i32_0 = arith.constant 0 : i32
    return %arg1, %arg0, %c0_i32 : i32, i32, i32
  }
}

</mosaic_0001>

<llo_original>
// kernel: tpu_custom_call.1
$region0: #{tpu_custom_call.1}
  #allocation0 [shape = 'u32[]', space=smem, size = 0x4, offset = 0x4, fixed_abs, tag = 'smem constant byte address 0x4 - core index']
  #allocation1 [shape = 'u32[144,128]{1,0:T(1,128)}', space=vmem, size = 0x12000, scoped, tag = 'internal scratch']
  %s0 = inlined_call_operand.hbm [shape: f32[2,8,512], index: 0, kind: input, shape index: {}, may-alias: {0,2}]
  %s1 = inlined_call_operand.vmem [shape: f32[8,512], index: 1, kind: input, shape index: {}]
  %s2 = inlined_call_operand.hbm [shape: f32[2,8,512], index: 2, kind: output, shape index: {}, may-alias: {0,2}]
  %s3 = sld [smem:[#allocation0]]
  $region22: #{tpu_custom_call.1} parent=0
    _
  %s5 = ssub.s32 1, %s3
  %s6 = scalar_select 0, %s5, %s3
  $region1: #{tpu_custom_call.1} parent=0
    #allocation2 [shape = 'u8[32768]{0}', space=vmem, size = 0x8000, scoped, tag = 'input window, operand 0, single buffered']
    #allocation3 [shape = 's32[1]{0}', space=sflag, size = 0x4, scoped, tag = 'scoped memory for tpu_custom_call.1']
    #allocation4 [shape = 's32[1]{0}', space=sflag, size = 0x4, scoped, tag = 'scoped memory for tpu_custom_call.1']
    #allocation5 [shape = 'u8[32768]{0}', space=vmem, size = 0x8000, scoped, tag = 'output window, operand 0, single buffered']
    %7 = vsyncpa [#allocation3], 0
    %8 = vsyncpa [#allocation4], 0
    // Predicated region
    $region2: #{tpu_custom_call.1} parent=1 // pred_check
      _
    $region3: #{tpu_custom_call.1} parent=1 // pred_check_branch
      %10 = sbr.rel (0) target = $region5
    $region4: #{tpu_custom_call.1} parent=1 // pred_region
      %s12 = ssub.s32 1024, 1024
      %13 = vsyncadd [#allocation3], %s12
      %s14 = sshll.u32 [#allocation2], 4
      %s15 = int_to_ptr.vmem [resolvable:$true] %s14
      %20 = dma.hbm_to_vmem [thread:$0]  %s0, 1024, %s15, [#allocation3], 512, 512, 32
    $region5: #{tpu_custom_call.1} parent=1 // pred_fallthru
      _
    // Predicated region
    $region6: #{tpu_custom_call.1} parent=1 // pred_check
      _
    $region7: #{tpu_custom_call.1} parent=1 // pred_check_branch
      %22 = sbr.rel (0) target = $region9
    $region8: #{tpu_custom_call.1} parent=1 // pred_region
      _
    $region9: #{tpu_custom_call.1} parent=1 // pred_fallthru
      _
    // Predicated region
    $region10: #{tpu_custom_call.1} parent=1 // pred_check
      _
    $region11: #{tpu_custom_call.1} parent=1 // pred_check_branch
      %24 = sbr.rel (0) target = $region13
    $region12: #{tpu_custom_call.1} parent=1 // pred_region
      %25 = dma.done [#allocation3], 1024
    $region13: #{tpu_custom_call.1} parent=1 // pred_fallthru
      _
    %v26 = vld [vmem:[#allocation2] sm:$0xff]
    %v27 = vld [vmem:[#allocation2 + $0x8] sm:$0xff]
    %v28 = vld [vmem:[#allocation2 + $0x10] sm:$0xff]
    %v29 = vld [vmem:[#allocation2 + $0x18] sm:$0xff]
    %v30 = vld [vmem:[#allocation2 + $0x20] sm:$0xff]
    %v31 = vld [vmem:[#allocation2 + $0x28] sm:$0xff]
    %v32 = vld [vmem:[#allocation2 + $0x30] sm:$0xff]
    %v33 = vld [vmem:[#allocation2 + $0x38] sm:$0xff]
    %v34 = vld [vmem:[%s1] sm:$0xff]
    %v35 = vld [vmem:[%s1 + $0x8] sm:$0xff]
    %v36 = vld [vmem:[%s1 + $0x10] sm:$0xff]
    %v37 = vld [vmem:[%s1 + $0x18] sm:$0xff]
    %v38 = vadd.f32 %v26, %v34
    %v39 = vadd.f32 %v27, %v35
    %v40 = vadd.f32 %v28, %v36
    %v41 = vadd.f32 %v29, %v37
    %v42 = vadd.f32 %v30, %v34
    %v43 = vadd.f32 %v31, %v35
    %v44 = vadd.f32 %v32, %v36
    %v45 = vadd.f32 %v33, %v37
    %46 = vst [vmem:[#allocation5] sm:$0xff] %v38
    %47 = vst [vmem:[#allocation5 + $0x8] sm:$0xff] %v39
    %48 = vst [vmem:[#allocation5 + $0x10] sm:$0xff] %v40
    %49 = vst [vmem:[#allocation5 + $0x18] sm:$0xff] %v41
    %50 = vst [vmem:[#allocation5 + $0x20] sm:$0xff] %v42
    %51 = vst [vmem:[#allocation5 + $0x28] sm:$0xff] %v43
    %52 = vst [vmem:[#allocation5 + $0x30] sm:$0xff] %v44
    %53 = vst [vmem:[#allocation5 + $0x38] sm:$0xff] %v45
    // Predicated region
    $region14: #{tpu_custom_call.1} parent=1 // pred_check
      _
    $region15: #{tpu_custom_call.1} parent=1 // pred_check_branch
      %55 = sbr.rel (0) target = $region17
    $region16: #{tpu_custom_call.1} parent=1 // pred_region
      %s57 = ssub.s32 1024, 1024
      %58 = vsyncadd [#allocation4], %s57
      %s59 = sshll.u32 [#allocation5], 4
      %s60 = int_to_ptr.vmem [resolvable:$true] %s59
      %65 = dma.vmem_to_hbm [thread:$0]  %s60, 1024, %s2, [#allocation4], 512, 512, 32
    $region17: #{tpu_custom_call.1} parent=1 // pred_fallthru
      _
    // Predicated region
    $region18: #{tpu_custom_call.1} parent=1 // pred_check
      _
    $region19: #{tpu_custom_call.1} parent=1 // pred_check_branch
      %67 = sbr.rel (0) target = $region21
    $region20: #{tpu_custom_call.1} parent=1 // pred_region
      %68 = dma.done [#allocation4], 1024
    $region21: #{tpu_custom_call.1} parent=1 // pred_fallthru
      _
    %69 = vsyncpa [#allocation3], 1
    %70 = vsyncpa [#allocation4], 1

</llo_original>
